<compile_context>
chip_gen: v7x
topology: tpu7x:2x2x1
jax: 0.10.0
libtpu: 0.0.40
codegen_flags: <defaults>
</compile_context>

<pallas_src>
import functools
import math

import jax
import jax.numpy as jnp
from jax import lax
from jax.experimental import pallas as pl
from jax.experimental.pallas import tpu as pltpu


NEG_INF = -1e30  # large finite negative (avoids -inf - -inf NaN pitfalls)


def lambda_init_fn(depth):
    return 0.8 - 0.6 * math.exp(-0.3 * depth)


def _pick_tile(dim, target, align):
    """Largest multiple of `align` that divides `dim` and is <= target, else `dim`
    (a block dim equal to the full array dim is always legal)."""
    if dim <= target:
        return dim
    t = (target // align) * align
    while t >= align:
        if dim % t == 0:
            return t
        t -= align
    return dim


# ---------------------------------------------------------------------------
# Tiled linear projection: out = x @ w_t  with w_t already (K, N) and bf16.
# ---------------------------------------------------------------------------
def _linear_kernel(x_ref, w_ref, o_ref, acc_ref):
    @pl.when(pl.program_id(2) == 0)
    def _init():
        acc_ref[...] = jnp.zeros(acc_ref.shape, jnp.float32)

    acc_ref[...] += jnp.dot(x_ref[...], w_ref[...],
                            preferred_element_type=jnp.float32)

    @pl.when(pl.program_id(2) == pl.num_programs(2) - 1)
    def _flush():
        o_ref[...] = acc_ref[...].astype(o_ref.dtype)


def pallas_linear(x2d, w_t, out_dtype, *, tm=512, tn=512, tk=512):
    """x2d: (M, K) bf16; w_t: (K, N) bf16 (transposed & cast once in the wrapper)."""
    M, K = x2d.shape
    Kw, N = w_t.shape
    assert K == Kw
    tm = _pick_tile(M, tm, 16)
    tn = _pick_tile(N, tn, 128)
    tk = _pick_tile(K, tk, 128)
    grid = (M // tm, N // tn, K // tk)
    in_bytes = x2d.dtype.itemsize
    out_bytes = jnp.dtype(out_dtype).itemsize
    return pl.pallas_call(
        _linear_kernel,
        out_shape=jax.ShapeDtypeStruct((M, N), out_dtype),
        grid=grid,
        in_specs=[
            pl.BlockSpec((tm, tk), lambda i, j, k: (i, k)),
            pl.BlockSpec((tk, tn), lambda i, j, k: (k, j)),
        ],
        out_specs=pl.BlockSpec((tm, tn), lambda i, j, k: (i, j)),
        scratch_shapes=[pltpu.VMEM((tm, tn), jnp.float32)],
        compiler_params=pltpu.CompilerParams(
            dimension_semantics=("parallel", "parallel", "arbitrary"),
            vmem_limit_bytes=48 * 1024 * 1024),
        cost_estimate=pl.CostEstimate(
            flops=int(2 * M * N * K),
            transcendentals=0,
            bytes_accessed=int((M * K + N * K) * in_bytes + M * N * out_bytes)),
    )(x2d, w_t)


# ---------------------------------------------------------------------------
# Differential-attention kernel (flash-style, triangular causal grid,
# head-batched MXU matmuls per v-head group).
# ---------------------------------------------------------------------------
def _diff_attn_kernel(nkvh, n_rep, hd, t_blk,
                      qi_tab_ref, ki_tab_ref, gl_ref, q_ref, kv_ref, o_ref,
                      qs_ref, m_ref, l_ref, acc_ref):
    two_hd = 2 * hd
    n_qh = 2 * nkvh * n_rep              # raw q heads
    nh = nkvh * n_rep                    # differential heads
    Ek = 2 * nkvh * hd                   # width of the K section of the fused kv block
    rows = 2 * n_rep * t_blk             # stacked rows per v-head group

    s = pl.program_id(1)
    qi = qi_tab_ref[s]
    ki = ki_tab_ref[s]

    @pl.when(ki == 0)
    def _init():
        m_ref[...] = jnp.full(m_ref.shape, NEG_INF, jnp.float32)
        l_ref[...] = jnp.zeros(l_ref.shape, jnp.float32)
        acc_ref[...] = jnp.zeros(acc_ref.shape, jnp.float32)
        # Stage all q heads once per q tile (hoisted out of the KV loop).
        # Group vh owns q heads h in [2*vh*n_rep, 2*(vh+1)*n_rep); head h sits at row
        # block j = h % (2*n_rep) and in column half c = (h // n_rep) % 2, which selects
        # which of the group's two k heads it attends to.  The other half is zero, so one
        # (rows, 2*hd) x (2*hd, t_blk) matmul per group yields every score of the group.
        for vh in range(nkvh):
            parts = []
            for j in range(2 * n_rep):
                h = vh * 2 * n_rep + j
                c = (h // n_rep) % 2
                qh = q_ref[0, :, h * hd:(h + 1) * hd]          # (t_blk, hd) bf16, scaled
                z = jnp.zeros((t_blk, hd), qh.dtype)
                parts.append(jnp.concatenate([qh, z] if c == 0 else [z, qh], axis=-1))
            qs_ref[vh] = jnp.concatenate(parts, axis=0)        # (rows, 2*hd)

    def online_update(masked):
        if masked:
            # diagonal tile: q_start == kv_start, only local indices matter
            r = lax.broadcasted_iota(jnp.int32, (t_blk, t_blk), 0)
            c = lax.broadcasted_iota(jnp.int32, (t_blk, t_blk), 1)
            bias1 = jnp.where(r >= c, 0.0, NEG_INF).astype(jnp.float32)
            bias = jnp.concatenate([bias1] * (2 * n_rep), axis=0)   # (rows, t_blk)
        for vh in range(nkvh):
            # contiguous slices of the fused kv block (k heads 2vh, 2vh+1 / v head vh)
            kk = kv_ref[0, :, 2 * vh * hd:(2 * vh + 2) * hd]        # (t_blk, 2*hd) bf16
            vv = kv_ref[0, :, Ek + vh * two_hd:Ek + (vh + 1) * two_hd]
            sc = lax.dot_general(qs_ref[vh], kk, (((1,), (1,)), ((), ())),
                                 preferred_element_type=jnp.float32)  # (rows, t_blk)
            if masked:
                sc = sc + bias
            m_prev = m_ref[vh]                                      # (rows, 1)
            m_new = jnp.maximum(m_prev, jnp.max(sc, axis=-1, keepdims=True))
            alpha = jnp.exp(m_prev - m_new)
            p = jnp.exp(sc - m_new)                                 # f32, unnormalized
            l_ref[vh] = alpha * l_ref[vh] + jnp.sum(p, axis=-1, keepdims=True)
            acc_ref[vh] = alpha * acc_ref[vh] + jnp.dot(
                p.astype(kv_ref.dtype), vv, preferred_element_type=jnp.float32)
            m_ref[vh] = m_new

    # KV tiles strictly below the causal diagonal: no masking needed.
    @pl.when(ki < qi)
    def _off_diag():
        online_update(masked=False)

    # Diagonal KV tile: masked update, then finalize (deferred normalization,
    # lambda-weighted difference, RMSNorm with (1-lambda_init) pre-folded into gamma)
    # and a lane-dense write of the (tile, E) output block.
    @pl.when(ki == qi)
    def _diag_and_finalize():
        online_update(masked=True)
        gamma = gl_ref[0:1, :]                                      # (1, 2*hd)
        lam = gl_ref[1:2, :]                                        # (1, 2*hd), constant row
        direct = (two_hd % 128 == 0)
        outs = []
        for vh in range(nkvh):
            inv_l = pl.reciprocal(l_ref[vh], approx=True)           # (rows, 1)
            og = acc_ref[vh] * inv_l                                # normalized group output
            for jj in range(n_rep):
                i = vh * n_rep + jj                                 # differential head index
                j1 = 2 * jj
                o1 = og[j1 * t_blk:(j1 + 1) * t_blk]
                o2 = og[(j1 + 1) * t_blk:(j1 + 2) * t_blk]
                a = o1 - lam * o2
                ms = jnp.mean(a * a, axis=-1, keepdims=True)
                a = a * lax.rsqrt(ms + 1e-5) * gamma
                if direct:
                    o_ref[0, :, i * two_hd:(i + 1) * two_hd] = a.astype(o_ref.dtype)
                else:
                    outs.append(a)
        if not direct:
            o_ref[0] = jnp.concatenate(outs, axis=-1).astype(o_ref.dtype)


# ---------------------------------------------------------------------------
# Full forward pass (matches MultiheadSdpaDiff4.forward with rel_pos=None,
# attn_mask=None, tgt_len > 1 => causal).
# ---------------------------------------------------------------------------
def multihead_sdpa_diff4(x, params, *, num_heads, num_kv_heads=None, depth, tile=256):
    # TODO(synk): rel_pos (rotary) and explicit attn_mask paths of the reference forward
    # are not implemented; only the default causal path (rel_pos=None, attn_mask=None).
    B, T, E = x.shape
    if num_kv_heads is None:
        num_kv_heads = num_heads
    nh = num_heads // 2                  # differential heads
    nkvh = num_kv_heads // 2
    n_rep = nh // nkvh
    hd = E // num_heads
    two_hd = 2 * hd
    Ek = E // n_rep                      # = 2*nkvh*hd = nkvh*(2*hd)
    lambda_init = lambda_init_fn(depth)
    scale = 1.0 / math.sqrt(hd)
    mxu_dtype = jnp.bfloat16

    # --- projections: bf16 MXU I/O, weights transposed/cast once, scale folded into q,
    #     k & v fused into a single GEMM ---
    x2d = x.reshape(B * T, E).astype(mxu_dtype)
    w_q_t = (params["q_proj"] * scale).T.astype(mxu_dtype)                     # (E, E)
    w_kv_t = jnp.concatenate([params["k_proj"], params["v_proj"]],
                             axis=0).T.astype(mxu_dtype)                       # (E, 2*Ek)
    w_o_t = params["out_proj"].T.astype(mxu_dtype)                             # (E, E)

    q = pallas_linear(x2d, w_q_t, mxu_dtype).reshape(B, T, E)
    kv = pallas_linear(x2d, w_kv_t, mxu_dtype).reshape(B, T, 2 * Ek)

    # --- tiny params prepared once: row 0 = gamma*(1-lambda_init), row 1 = lambda_full ---
    lam_full = (jnp.exp(jnp.sum(params["lambda_q1"] * params["lambda_k1"]))
                - jnp.exp(jnp.sum(params["lambda_q2"] * params["lambda_k2"]))
                + lambda_init).astype(jnp.float32)
    gl = jnp.stack([
        params["subln_weight"].astype(jnp.float32) * (1.0 - lambda_init),
        jnp.broadcast_to(lam_full, (two_hd,)),
    ], axis=0)                                                                 # (2, 2*hd)

    # --- attention tile: lane-aligned when possible (128), correctness fallback else ---
    t_blk = _pick_tile(T, tile, 128)
    if t_blk == T and T > tile:
        t_blk = _pick_tile(T, tile, 8)
    n_t = T // t_blk
    rows = 2 * n_rep * t_blk

    # triangular causal grid: only the ki <= qi steps exist (qi-major, ki ascending =>
    # init at ki == 0, finalize at ki == qi, output block written back when qi advances)
    pairs = [(qi, ki) for qi in range(n_t) for ki in range(qi + 1)]
    qi_tab = jnp.asarray([p[0] for p in pairs], jnp.int32)
    ki_tab = jnp.asarray([p[1] for p in pairs], jnp.int32)
    n_steps = len(pairs)

    kernel = functools.partial(_diff_attn_kernel, nkvh, n_rep, hd, t_blk)

    cost = pl.CostEstimate(
        flops=int(2 * B * n_steps * nkvh * rows * t_blk * (two_hd + two_hd)),
        transcendentals=int(B * n_steps * nkvh * rows * t_blk),
        bytes_accessed=int(q.size * 2 + kv.size * 2 * max(1, (n_t + 1) // 2)
                           + B * T * E * 2))

    grid_spec = pltpu.PrefetchScalarGridSpec(
        num_scalar_prefetch=2,                       # qi / ki lookup tables -> SMEM
        grid=(B, n_steps),
        in_specs=[
            pl.BlockSpec((2, two_hd), lambda b, s, qt, kt: (0, 0)),              # gl
            pl.BlockSpec((1, t_blk, E), lambda b, s, qt, kt: (b, qt[s], 0)),     # q (scaled bf16)
            pl.BlockSpec((1, t_blk, 2 * Ek), lambda b, s, qt, kt: (b, kt[s], 0)),  # fused kv
        ],
        out_specs=pl.BlockSpec((1, t_blk, E), lambda b, s, qt, kt: (b, qt[s], 0)),
        scratch_shapes=[
            pltpu.VMEM((nkvh, rows, two_hd), mxu_dtype),     # staged (zero-padded) q
            pltpu.VMEM((nkvh, rows, 1), jnp.float32),        # running max
            pltpu.VMEM((nkvh, rows, 1), jnp.float32),        # running sum
            pltpu.VMEM((nkvh, rows, two_hd), jnp.float32),   # unnormalized acc
        ])
    # TODO(synk): for very large nh on v7x (64 MiB VMEM), split the v-head groups over an
    # extra grid axis so the f32 acc/m/l scratch stays within budget.

    attn = pl.pallas_call(
        kernel,
        out_shape=jax.ShapeDtypeStruct((B, T, E), mxu_dtype),
        grid_spec=grid_spec,
        compiler_params=pltpu.CompilerParams(
            dimension_semantics=("parallel", "arbitrary"),
            vmem_limit_bytes=48 * 1024 * 1024),
        cost_estimate=cost,
    )(qi_tab, ki_tab, gl, q, kv)

    # output projection consumed directly in (B*T, E) bf16 layout (no transposes anywhere)
    out = pallas_linear(attn.reshape(B * T, E), w_o_t, x.dtype).reshape(B, T, E)
    return out


# ---------------------------------------------------------------------------
# Pure-JAX reference (mirrors the PyTorch forward) for a sanity check.
# ---------------------------------------------------------------------------
def reference(x, params, *, num_heads, num_kv_heads, depth):
    B, T, E = x.shape
    nh = num_heads // 2
    nkvh = num_kv_heads // 2
    n_rep = nh // nkvh
    hd = E // num_heads
    lambda_init = lambda_init_fn(depth)

    q = x @ params["q_proj"].T
    k = x @ params["k_proj"].T
    v = x @ params["v_proj"].T
    q = q.reshape(B, T, 2 * nh, hd).transpose(0, 2, 1, 3)
    k = jnp.repeat(k.reshape(B, T, 2 * nkvh, hd), n_rep, axis=2).transpose(0, 2, 1, 3)
    v = jnp.repeat(v.reshape(B, T, nkvh, 2 * hd), 2 * n_rep, axis=2).transpose(0, 2, 1, 3)

    s = jnp.einsum("bhqd,bhkd->bhqk", q, k) / math.sqrt(hd)
    mask = jnp.tril(jnp.ones((T, T), bool))
    s = jnp.where(mask, s, -jnp.inf)
    p = jax.nn.softmax(s, axis=-1)
    aw = jnp.einsum("bhqk,bhkd->bhqd", p, v)

    attn1 = aw[:, 0::2]
    attn2 = aw[:, 1::2]
    lam = (jnp.exp(jnp.sum(params["lambda_q1"] * params["lambda_k1"]))
           - jnp.exp(jnp.sum(params["lambda_q2"] * params["lambda_k2"]))
           + lambda_init)
    a = attn1 - lam * attn2
    a = a * jax.lax.rsqrt(jnp.mean(a * a, axis=-1, keepdims=True) + 1e-5)
    a = a * params["subln_weight"]
    a = a * (1 - lambda_init)
    a = a.transpose(0, 2, 1, 3).reshape(B, T, E)
    return a @ params["out_proj"].T


if __name__ == "__main__":
    B, T, E = 2, 16, 128
    num_heads, num_kv_heads, depth = 4, 2, 2
    head_dim = E // num_heads            # 32
    n_rep = num_heads // num_kv_heads    # 2

    key = jax.random.PRNGKey(0)
    ks = jax.random.split(key, 9)
    params = {
        "q_proj": 0.05 * jax.random.normal(ks[0], (E, E), jnp.float32),
        "k_proj": 0.05 * jax.random.normal(ks[1], (E // n_rep, E), jnp.float32),
        "v_proj": 0.05 * jax.random.normal(ks[2], (E // n_rep, E), jnp.float32),
        "out_proj": 0.05 * jax.random.normal(ks[3], (E, E), jnp.float32),
        "lambda_q1": 0.1 * jax.random.normal(ks[4], (head_dim,), jnp.float32),
        "lambda_k1": 0.1 * jax.random.normal(ks[5], (head_dim,), jnp.float32),
        "lambda_q2": 0.1 * jax.random.normal(ks[6], (head_dim,), jnp.float32),
        "lambda_k2": 0.1 * jax.random.normal(ks[7], (head_dim,), jnp.float32),
        "subln_weight": jnp.ones((2 * head_dim,), jnp.float32),  # RMSNorm weight init
    }
    x = jax.random.normal(ks[8], (B, T, E), jnp.float32)

    out = multihead_sdpa_diff4(
        x, params, num_heads=num_heads, num_kv_heads=num_kv_heads, depth=depth)
    out = jax.block_until_ready(out)

    ref = jax.block_until_ready(
        reference(x, params, num_heads=num_heads, num_kv_heads=num_kv_heads, depth=depth))

    assert out.shape == (B, T, E), out.shape
    assert bool(jnp.all(jnp.isfinite(out)))
    max_err = float(jnp.max(jnp.abs(out - ref)))
    # bf16 activations/weights end-to-end (f32 accumulation) + approx reciprocal
    # => 3e-2 tolerance vs the f32 reference
    assert bool(jnp.allclose(out, ref, atol=3e-2, rtol=3e-2)), max_err
    print("KERNEL_OK")
</pallas_src>

<mosaic_0001>
module attributes {stable_mosaic.version = 11 : i64} {
  func.func @_linear_kernel(%arg0: i32, %arg1: i32, %arg2: i32, %arg3: memref<32x128xbf16, #tpu.memory_space<vmem>>, %arg4: memref<128x128xbf16, #tpu.memory_space<vmem>>, %arg5: memref<32x128xbf16, #tpu.memory_space<vmem>>, %arg6: memref<32x128xf32, #tpu.memory_space<vmem>>) attributes {dimension_semantics = [#tpu.dimension_semantics<parallel>, #tpu.dimension_semantics<parallel>, #tpu.dimension_semantics<arbitrary>], iteration_bounds = array<i64: 1, 1, 1>, scalar_prefetch = 0 : i64, scratch_operands = 1 : i64, tpu.core_type = #tpu.core_type<tc>, window_params = [{transform_indices = @transform_0, window_bounds = array<i64: 32, 128>}, {transform_indices = @transform_1, window_bounds = array<i64: 128, 128>}, {transform_indices = @transform_2, window_bounds = array<i64: 32, 128>}]} {
    %c0_i32 = arith.constant 0 : i32
    %0 = arith.cmpi eq, %arg2, %c0_i32 : i32
    %1 = arith.extui %0 : i1 to i32
    %c0_i32_0 = arith.constant 0 : i32
    %2 = arith.cmpi ne, %1, %c0_i32_0 : i32
    scf.if %2 {
      %cst_10 = arith.constant 0.000000e+00 : f32
      %12 = vector.broadcast %cst_10 : f32 to vector<32x128xf32>
      %c0_11 = arith.constant 0 : index
      %c0_12 = arith.constant 0 : index
      %13 = vector.load %arg6[%c0_11, %c0_12] : memref<32x128xf32, #tpu.memory_space<vmem>>, vector<32x128xf32>
      tpu.vector_store %arg6[%c0_11, %c0_12], %12 {strides = array<i32>} : memref<32x128xf32, #tpu.memory_space<vmem>>, vector<32x128xf32>,
    } else {
    }
    %c0 = arith.constant 0 : index
    %c0_1 = arith.constant 0 : index
    %3 = vector.load %arg6[%c0, %c0_1] : memref<32x128xf32, #tpu.memory_space<vmem>>, vector<32x128xf32>
    %c0_2 = arith.constant 0 : index
    %c0_3 = arith.constant 0 : index
    %4 = vector.load %arg3[%c0_2, %c0_3] : memref<32x128xbf16, #tpu.memory_space<vmem>>, vector<32x128xbf16>
    %c0_4 = arith.constant 0 : index
    %c0_5 = arith.constant 0 : index
    %5 = vector.load %arg4[%c0_4, %c0_5] : memref<128x128xbf16, #tpu.memory_space<vmem>>, vector<128x128xbf16>
    %cst = arith.constant dense<0.000000e+00> : vector<32x128xf32>
    %6 = tpu.matmul %4, %5, %cst {dimension_numbers = #tpu.dot_dimension_numbers<[1], [0], [0], [1], [0, 0, 1, 1], [], []>} : vector<32x128xbf16>, vector<128x128xbf16>, vector<32x128xf32> -> vector<32x128xf32>
    %7 = arith.addf %3, %6 : vector<32x128xf32>
    %c0_6 = arith.constant 0 : index
    %c0_7 = arith.constant 0 : index
    %8 = vector.load %arg6[%c0_6, %c0_7] : memref<32x128xf32, #tpu.memory_space<vmem>>, vector<32x128xf32>
    tpu.vector_store %arg6[%c0_6, %c0_7], %7 {strides = array<i32>} : memref<32x128xf32, #tpu.memory_space<vmem>>, vector<32x128xf32>,
    %c0_i32_8 = arith.constant 0 : i32
    %9 = arith.cmpi eq, %arg2, %c0_i32_8 : i32
    %10 = arith.extui %9 : i1 to i32
    %c0_i32_9 = arith.constant 0 : i32
    %11 = arith.cmpi ne, %10, %c0_i32_9 : i32
    scf.if %11 {
      %c0_10 = arith.constant 0 : index
      %c0_11 = arith.constant 0 : index
      %12 = vector.load %arg6[%c0_10, %c0_11] : memref<32x128xf32, #tpu.memory_space<vmem>>, vector<32x128xf32>
      %13 = arith.truncf %12 : vector<32x128xf32> to vector<32x128xbf16>
      %c0_12 = arith.constant 0 : index
      %c0_13 = arith.constant 0 : index
      %14 = vector.load %arg5[%c0_12, %c0_13] : memref<32x128xbf16, #tpu.memory_space<vmem>>, vector<32x128xbf16>
      tpu.vector_store %arg5[%c0_12, %c0_13], %13 {strides = array<i32>} : memref<32x128xbf16, #tpu.memory_space<vmem>>, vector<32x128xbf16>,
    } else {
    }
    return
  }
  func.func @transform_0(%arg0: i32, %arg1: i32, %arg2: i32) -> (i32, i32) {
    %c0_i32 = arith.constant 0 : i32
    return %arg0, %arg2 : i32, i32
  }
  func.func @transform_1(%arg0: i32, %arg1: i32, %arg2: i32) -> (i32, i32) {
    %c0_i32 = arith.constant 0 : i32
    return %arg2, %arg1 : i32, i32
  }
  func.func @transform_2(%arg0: i32, %arg1: i32, %arg2: i32) -> (i32, i32) {
    %c0_i32 = arith.constant 0 : i32
    return %arg0, %arg1 : i32, i32
  }
}

</mosaic_0001>

<llo_original>
// kernel: tpu_custom_call.1
$region0: #{tpu_custom_call.1}
  #allocation0 [shape = 'u32[]', space=smem, size = 0x4, offset = 0x4, fixed_abs, tag = 'smem constant byte address 0x4 - core index']
  #allocation1 [shape = 'u32[144,128]{1,0:T(1,128)}', space=vmem, size = 0x12000, scoped, tag = 'internal scratch']
  #allocation2 [shape = 'f32[32,128]{1,0:T(8,128)}', space=vmem, size = 0x4000, scoped, tag = 'scratch operand']
  %s0 = inlined_call_operand.hbm [shape: bf16[32,128], index: 0, kind: input, shape index: {}]
  %s1 = inlined_call_operand.hbm [shape: bf16[128,128], index: 1, kind: input, shape index: {}]
  %s2 = inlined_call_operand.hbm [shape: bf16[32,128], index: 2, kind: output, shape index: {}]
  %s3 = sld [smem:[#allocation0]]
  $region34: #{tpu_custom_call.1} parent=0
    _
  %s5 = ssub.s32 1, %s3
  %s6 = scalar_select 0, %s5, %s3
  $region1: #{tpu_custom_call.1} parent=0
    #allocation3 [shape = 'u8[8192]{0}', space=vmem, size = 0x2000, scoped, tag = 'input window, operand 0, single buffered']
    #allocation4 [shape = 's32[1]{0}', space=sflag, size = 0x4, scoped, tag = 'scoped memory for tpu_custom_call.1']
    #allocation5 [shape = 's32[1]{0}', space=sflag, size = 0x4, scoped, tag = 'scoped memory for tpu_custom_call.1']
    #allocation6 [shape = 'u8[32768]{0}', space=vmem, size = 0x8000, scoped, tag = 'input window, operand 1, single buffered']
    #allocation7 [shape = 's32[1]{0}', space=sflag, size = 0x4, scoped, tag = 'scoped memory for tpu_custom_call.1']
    #allocation8 [shape = 'u8[8192]{0}', space=vmem, size = 0x2000, scoped, tag = 'output window, operand 0, single buffered']
    %7 = vsyncpa [#allocation4], 0
    %8 = vsyncpa [#allocation7], 0
    %9 = vsyncpa [#allocation5], 0
    // Predicated region
    $region2: #{tpu_custom_call.1} parent=1 // pred_check
      _
    $region3: #{tpu_custom_call.1} parent=1 // pred_check_branch
      %11 = sbr.rel (0) target = $region5
    $region4: #{tpu_custom_call.1} parent=1 // pred_region
      %s13 = ssub.s32 256, 256
      %14 = vsyncadd [#allocation4], %s13
      %s15 = sshll.u32 [#allocation3], 4
      %s16 = int_to_ptr.vmem [resolvable:$true] %s15
      %21 = dma.hbm_to_vmem [thread:$0]  %s0, 256, %s16, [#allocation4], 64, 64, 4
    $region5: #{tpu_custom_call.1} parent=1 // pred_fallthru
      _
    // Predicated region
    $region6: #{tpu_custom_call.1} parent=1 // pred_check
      _
    $region7: #{tpu_custom_call.1} parent=1 // pred_check_branch
      %23 = sbr.rel (0) target = $region9
    $region8: #{tpu_custom_call.1} parent=1 // pred_region
      %s25 = ssub.s32 1024, 1024
      %26 = vsyncadd [#allocation7], %s25
      %s27 = sshll.u32 [#allocation6], 4
      %s28 = int_to_ptr.vmem [resolvable:$true] %s27
      %33 = dma.hbm_to_vmem [thread:$0]  %s1, 1024, %s28, [#allocation7], 64, 64, 4
    $region9: #{tpu_custom_call.1} parent=1 // pred_fallthru
      _
    // Predicated region
    $region10: #{tpu_custom_call.1} parent=1 // pred_check
      _
    $region11: #{tpu_custom_call.1} parent=1 // pred_check_branch
      %35 = sbr.rel (0) target = $region13
    $region12: #{tpu_custom_call.1} parent=1 // pred_region
      %36 = dma.done [#allocation4], 256
    $region13: #{tpu_custom_call.1} parent=1 // pred_fallthru
      _
    // Predicated region
    $region14: #{tpu_custom_call.1} parent=1 // pred_check
      _
    $region15: #{tpu_custom_call.1} parent=1 // pred_check_branch
      %38 = sbr.rel (0) target = $region17
    $region16: #{tpu_custom_call.1} parent=1 // pred_region
      %39 = dma.done [#allocation7], 1024
    $region17: #{tpu_custom_call.1} parent=1 // pred_fallthru
      _
    %p41 = scmp.eq.s32.totalorder 0, 0
    // Predicated region
    $region18: #{tpu_custom_call.1} parent=1 // pred_check
      %p42 = pneg %p41
    $region19: #{tpu_custom_call.1} parent=1 // pred_check_branch
      %44 = sbr.rel (%p42) target = $region21
    $region20: #{tpu_custom_call.1} parent=1 // pred_region
      %45 = vst [vmem:[#allocation2] sm:$0xff] 0.0
      %46 = vst [vmem:[#allocation2 + $0x8] sm:$0xff] 0.0
      %47 = vst [vmem:[#allocation2 + $0x10] sm:$0xff] 0.0
      %48 = vst [vmem:[#allocation2 + $0x18] sm:$0xff] 0.0
    $region21: #{tpu_custom_call.1} parent=1 // pred_fallthru
      _
    %v49 = vld [vmem:[#allocation2] sm:$0xff]
    %v50 = vld [vmem:[#allocation2 + $0x8] sm:$0xff]
    %v51 = vld [vmem:[#allocation2 + $0x10] sm:$0xff]
    %v52 = vld [vmem:[#allocation2 + $0x18] sm:$0xff]
    %v53 = vld [vmem:[#allocation3] sm:$0xf]
    %v54 = vld [vmem:[#allocation3 + $0x4] sm:$0xf]
    %v55 = vld [vmem:[#allocation3 + $0x8] sm:$0xf]
    %v56 = vld [vmem:[#allocation3 + $0xc] sm:$0xf]
    %v57 = vld [vmem:[#allocation6] sm:$0xf]
    %v58 = vld [vmem:[#allocation6 + $0x4] sm:$0xf]
    %v59 = vld [vmem:[#allocation6 + $0x8] sm:$0xf]
    %v60 = vld [vmem:[#allocation6 + $0xc] sm:$0xf]
    %v61 = vld [vmem:[#allocation6 + $0x10] sm:$0xf]
    %v62 = vld [vmem:[#allocation6 + $0x14] sm:$0xf]
    %v63 = vld [vmem:[#allocation6 + $0x18] sm:$0xf]
    %v64 = vld [vmem:[#allocation6 + $0x1c] sm:$0xf]
    %v65 = vld [vmem:[#allocation6 + $0x20] sm:$0xf]
    %v66 = vld [vmem:[#allocation6 + $0x24] sm:$0xf]
    %v67 = vld [vmem:[#allocation6 + $0x28] sm:$0xf]
    %v68 = vld [vmem:[#allocation6 + $0x2c] sm:$0xf]
    %v69 = vld [vmem:[#allocation6 + $0x30] sm:$0xf]
    %v70 = vld [vmem:[#allocation6 + $0x34] sm:$0xf]
    %v71 = vld [vmem:[#allocation6 + $0x38] sm:$0xf]
    %v72 = vld [vmem:[#allocation6 + $0x3c] sm:$0xf]
    %v77 = vunpack.c.l.b16 %v53
    %v78 = vunpack.c.l.b16 %v54
    %v79 = vunpack.c.l.b16 %v55
    %v80 = vunpack.c.l.b16 %v56
    %v81 = vpack.c.b16 %v78, %v77
    %v82 = vpack.c.b16 %v80, %v79
    %v101 = vunpack.c.l.b16 %v57
    %v102 = vunpack.c.l.b16 %v58
    %v103 = vunpack.c.l.b16 %v59
    %v104 = vunpack.c.l.b16 %v60
    %v105 = vunpack.c.l.b16 %v61
    %v106 = vunpack.c.l.b16 %v62
    %v107 = vunpack.c.l.b16 %v63
    %v108 = vunpack.c.l.b16 %v64
    %v109 = vunpack.c.l.b16 %v65
    %v110 = vunpack.c.l.b16 %v66
    %v111 = vunpack.c.l.b16 %v67
    %v112 = vunpack.c.l.b16 %v68
    %v113 = vunpack.c.l.b16 %v69
    %v114 = vunpack.c.l.b16 %v70
    %v115 = vunpack.c.l.b16 %v71
    %v116 = vunpack.c.l.b16 %v72
    %v117 = vpack.c.b16 %v102, %v101
    %v118 = vpack.c.b16 %v104, %v103
    %v119 = vpack.c.b16 %v106, %v105
    %v120 = vpack.c.b16 %v108, %v107
    %v121 = vpack.c.b16 %v110, %v109
    %v122 = vpack.c.b16 %v112, %v111
    %v123 = vpack.c.b16 %v114, %v113
    %v124 = vpack.c.b16 %v116, %v115
    %133 = vmatprep.subr.bf16.mxu0 0
    %134 = vmatpush1.bf16.msra.mxu0 %v117
    %135 = vmatprep.subr.bf16.mxu0 0
    %136 = vmatpush1.bf16.msra.mxu0 %v118
    %137 = vmatprep.subr.bf16.mxu0 0
    %138 = vmatpush1.bf16.msra.mxu0 %v119
    %139 = vmatprep.subr.bf16.mxu0 0
    %140 = vmatpush1.bf16.msra.mxu0 %v120
    %141 = vmatprep.subr.bf16.mxu0 0
    %142 = vmatpush1.bf16.msra.mxu0 %v121
    %143 = vmatprep.subr.bf16.mxu0 0
    %144 = vmatpush1.bf16.msra.mxu0 %v122
    %145 = vmatprep.subr.bf16.mxu0 0
    %146 = vmatpush1.bf16.msra.mxu0 %v123
    %147 = vmatprep.subr.bf16.mxu0 0
    %148 = vmatpush1.bf16.msra.mxu0 %v124
    %149 = vmatprep.subr.bf16.mxu0 0
    %150 = vmatpush1.bf16.msra.mxu0 0
    %151 = vmatprep.subr.bf16.mxu0 0
    %152 = vmatpush1.bf16.msra.mxu0 0
    %153 = vmatprep.subr.bf16.mxu0 0
    %154 = vmatpush1.bf16.msra.mxu0 0
    %155 = vmatprep.subr.bf16.mxu0 0
    %156 = vmatpush1.bf16.msra.mxu0 0
    %157 = vmatprep.subr.bf16.mxu0 0
    %158 = vmatpush1.bf16.msra.mxu0 0
    %159 = vmatprep.subr.bf16.mxu0 0
    %160 = vmatpush1.bf16.msra.mxu0 0
    %161 = vmatprep.subr.bf16.mxu0 0
    %162 = vmatpush1.bf16.msra.mxu0 0
    %163 = vmatprep.subr.bf16.mxu0 0
    %164 = vmatpush1.bf16.msra.mxu0 0
    %165 = vmatprep.mubr.bf16.mxu0 0
    %166 = vmatmul.mubr.bf16.gmra.mrb[0].mxu0 %v81
    %v167 = vpop.f32.mrb[0].mxu0
    %v168 = vadd.f32 0.0, %v167
    %v169 = vpop.f32.mrb[0].mxu0
    %v170 = vpop.f32.mrb[0].mxu0
    %v171 = vadd.f32 0.0, %v170
    %v172 = vpop.f32.mrb[0].mxu0
    %173 = vmatprep.mubr.bf16.mxu0 0
    %174 = vmatmul.mubr.bf16.gmra.mrb[0].mxu0 %v82
    %v175 = vpop.f32.mrb[0].mxu0
    %v176 = vadd.f32 0.0, %v175
    %v177 = vpop.f32.mrb[0].mxu0
    %v178 = vpop.f32.mrb[0].mxu0
    %v179 = vadd.f32 0.0, %v178
    %v180 = vpop.f32.mrb[0].mxu0
    %181 = vdwg.mxu0
    %v182 = vadd.f32 %v49, %v168
    %v183 = vadd.f32 %v50, %v171
    %v184 = vadd.f32 %v51, %v176
    %v185 = vadd.f32 %v52, %v179
    %186 = vst [vmem:[#allocation2] sm:$0xff] %v182
    %187 = vst [vmem:[#allocation2 + $0x8] sm:$0xff] %v183
    %188 = vst [vmem:[#allocation2 + $0x10] sm:$0xff] %v184
    %189 = vst [vmem:[#allocation2 + $0x18] sm:$0xff] %v185
    // Predicated region
    $region22: #{tpu_custom_call.1} parent=1 // pred_check
      %p190 = pneg %p41
    $region23: #{tpu_custom_call.1} parent=1 // pred_check_branch
      %192 = sbr.rel (%p190) target = $region25
    $region24: #{tpu_custom_call.1} parent=1 // pred_region
      %v193 = vld [vmem:[#allocation2] sm:$0xff]
      %v194 = vld [vmem:[#allocation2 + $0x8] sm:$0xff]
      %v195 = vld [vmem:[#allocation2 + $0x10] sm:$0xff]
      %v196 = vld [vmem:[#allocation2 + $0x18] sm:$0xff]
      %v197 = vpack.c.bf16 %v194, %v193
      %v198 = vpack.c.bf16 %v196, %v195
      %v201 = vunpack.c.l.b16 %v197
      %v202 = vunpack.c.h.b16 %v197
      %v203 = vunpack.c.l.b16 %v198
      %v204 = vunpack.c.h.b16 %v198
      %v205 = vpack.c.b16 %v201, %v201
      %v206 = vpack.c.b16 %v202, %v202
      %v207 = vpack.c.b16 %v203, %v203
      %v208 = vpack.c.b16 %v204, %v204
      %213 = vst [vmem:[#allocation8] sm:$0xf] %v205
      %214 = vst [vmem:[#allocation8 + $0x4] sm:$0xf] %v206
      %215 = vst [vmem:[#allocation8 + $0x8] sm:$0xf] %v207
      %216 = vst [vmem:[#allocation8 + $0xc] sm:$0xf] %v208
    $region25: #{tpu_custom_call.1} parent=1 // pred_fallthru
      _
    // Predicated region
    $region26: #{tpu_custom_call.1} parent=1 // pred_check
      _
    $region27: #{tpu_custom_call.1} parent=1 // pred_check_branch
      %218 = sbr.rel (0) target = $region29
    $region28: #{tpu_custom_call.1} parent=1 // pred_region
      %s220 = ssub.s32 256, 256
      %221 = vsyncadd [#allocation5], %s220
      %s222 = sshll.u32 [#allocation8], 4
      %s223 = int_to_ptr.vmem [resolvable:$true] %s222
      %228 = dma.vmem_to_hbm [thread:$0]  %s223, 256, %s2, [#allocation5], 64, 64, 4
    $region29: #{tpu_custom_call.1} parent=1 // pred_fallthru
      _
    // Predicated region
    $region30: #{tpu_custom_call.1} parent=1 // pred_check
      _
    $region31: #{tpu_custom_call.1} parent=1 // pred_check_branch
      %230 = sbr.rel (0) target = $region33
    $region32: #{tpu_custom_call.1} parent=1 // pred_region
      %231 = dma.done [#allocation5], 256
    $region33: #{tpu_custom_call.1} parent=1 // pred_fallthru
      _
    %232 = vsyncpa [#allocation4], 1
    %233 = vsyncpa [#allocation7], 1
    %234 = vsyncpa [#allocation5], 1

</llo_original>
